<compile_context>
chip_gen: v7x
topology: tpu7x:2x2x1
jax: 0.10.0
libtpu: 0.0.40
codegen_flags: <defaults>
</compile_context>

<pallas_src>
import math
from functools import partial

import jax
import jax.numpy as jnp
from jax.experimental import pallas as pl
from jax.experimental.pallas import tpu as pltpu


# ----------------------------------------------------------------------------
# Pallas kernel: (TM, K) @ (K, N) + bias -> (TM, N), f32 accumulation
# ----------------------------------------------------------------------------
def _linear_bias_kernel(x_ref, w_ref, b_ref, o_ref):
    # Cast activations to bf16 on the VPU (kernel is HBM-bound, VALU has slack)
    x_bf = x_ref[...].astype(jnp.bfloat16)
    acc = jnp.dot(x_bf, w_ref[...], preferred_element_type=jnp.float32)
    o_ref[...] = (acc + b_ref[...]).astype(o_ref.dtype)


def _round_up(v, m):
    return ((v + m - 1) // m) * m


def _pick_tile_m(m_rows, cap):
    """Largest multiple-of-8 divisor of m_rows that is <= cap.

    Prefers >= 2 grid steps (v7x megacore balance) when m_rows allows it.
    Returns None if m_rows is not a multiple of 8 (caller falls back to pad).
    """
    if m_rows % 8 != 0:
        return None
    cap = max(8, (cap // 8) * 8)
    upper = min(cap, m_rows // 2 if m_rows >= 16 else m_rows)
    upper = max(8, (upper // 8) * 8)
    for cand in range(upper, 7, -8):
        if m_rows % cand == 0:
            return cand
    return m_rows if m_rows <= cap else None


def tiled_linear_bias(x2d, w2d, bias, *, out_dtype=jnp.float32, tile_m_cap=2048):
    """y = x2d @ w2d + bias with bf16 MXU inputs / f32 accumulation.

    x2d: (M, K), w2d: (K, N), bias: (N,) -> (M, N) out_dtype.
    Only M is tiled; the full N (= pd*ph*pw*C_out) stays resident per block.
    """
    M, K = x2d.shape
    K2, N = w2d.shape
    assert K == K2 and bias.shape == (N,)

    x_itemsize = jnp.dtype(x2d.dtype).itemsize
    out_itemsize = jnp.dtype(out_dtype).itemsize

    # VMEM budget: double-buffered x + out blocks kept under ~24 MiB so the
    # kernel is comfortable on v7x (64 MiB physical VMEM) while still large
    # enough to sit at the HBM roofline on v5e/v6e.
    bytes_per_row = K * x_itemsize + N * out_itemsize
    cap = (24 * 1024 * 1024) // (2 * bytes_per_row)
    cap = max(64, min(int(tile_m_cap), cap))
    cap = (cap // 8) * 8

    tm = _pick_tile_m(M, cap)
    if tm is None:
        # Rare fallback (M not a multiple of 8): pad rows.  Padded rows are
        # computed and sliced off; nothing reads the padded region before that.
        tm = min(cap, _round_up(M, 8))
        Mp = _round_up(M, tm)
        x2d = jnp.pad(x2d, ((0, Mp - M), (0, 0)))
    else:
        Mp = M

    w_bf = w2d.astype(jnp.bfloat16)                 # tiny; pre-cast once
    b2d = bias.reshape(1, N).astype(jnp.float32)

    grid = (Mp // tm,)
    vmem_need = 2 * tm * bytes_per_row + 2 * (K * N * 2 + N * 4)
    vmem_limit = int(min(48 * 1024 * 1024,
                         max(16 * 1024 * 1024, vmem_need * 3 // 2 + (2 << 20))))
    cost = pl.CostEstimate(
        flops=2 * Mp * K * N,
        transcendentals=0,
        bytes_accessed=Mp * K * x_itemsize + K * N * 2 + N * 4
        + Mp * N * out_itemsize,
    )

    out = pl.pallas_call(
        _linear_bias_kernel,
        out_shape=jax.ShapeDtypeStruct((Mp, N), out_dtype),
        grid=grid,
        in_specs=[
            pl.BlockSpec((tm, K), lambda i: (i, 0)),
            pl.BlockSpec((K, N), lambda i: (0, 0)),   # resident weights
            pl.BlockSpec((1, N), lambda i: (0, 0)),   # resident bias
        ],
        out_specs=pl.BlockSpec((tm, N), lambda i: (i, 0)),
        compiler_params=pltpu.CompilerParams(
            dimension_semantics=("parallel",),
            vmem_limit_bytes=vmem_limit,
        ),
        cost_estimate=cost,
    )(x2d, w_bf, b2d)

    return out[:M] if Mp != M else out


# ----------------------------------------------------------------------------
# final_patch_expanding forward
# ----------------------------------------------------------------------------
def final_patch_expanding_forward(x, weight, bias, patch_size,
                                  *, out_dtype=jnp.float32):
    """x: (B, D, H, W, C_in) channels-last (the module permutes to NCDHW itself).

    weight: (C_in, C_out, pd, ph, pw)  -- nn.ConvTranspose3d weight layout
    bias:   (C_out,)
    Returns (B, C_out, D*pd, H*ph, W*pw), matching the PyTorch module output.
    Inputs to the MXU are bf16-rounded with f32 accumulation (documented
    choice; pass out_dtype=jnp.bfloat16 to also halve the output HBM traffic
    if the downstream softmax/argmax tolerates it).
    """
    ps = (patch_size,) * 3 if isinstance(patch_size, int) else tuple(patch_size)
    pd, ph, pw = ps
    B, D, H, W, Cin = x.shape
    Cout = weight.shape[1]
    N = pd * ph * pw * Cout

    # kernel==stride transposed conv == per-voxel linear C_in -> pd*ph*pw*C_out
    # with output-column ordering (kd, kh, kw, co), then depth-to-space.
    w2d = jnp.transpose(weight, (0, 2, 3, 4, 1)).reshape(Cin, N)
    b_full = jnp.tile(bias, pd * ph * pw)        # bias[co] per kernel position

    y2d = tiled_linear_bias(x.reshape(B * D * H * W, Cin), w2d, b_full,
                            out_dtype=out_dtype)

    # Depth-to-space + NCDHW in ONE transpose (single XLA copy fusion):
    #   (B,D,H,W,pd,ph,pw,Co) -> (B,Co,D,pd,H,ph,W,pw) -> (B,Co,D*pd,H*ph,W*pw)
    # TODO(synk): fusing this permutation into the kernel's out_specs requires
    # an in-kernel lane<->sublane relayout of the matmul result (w/kw and h/kh
    # interleave); kept as one XLA transpose for robust Mosaic lowering.
    y = y2d.reshape(B, D, H, W, pd, ph, pw, Cout)
    return y.transpose(0, 7, 1, 4, 2, 5, 3, 6).reshape(
        B, Cout, D * pd, H * ph, W * pw)


# ----------------------------------------------------------------------------
if __name__ == "__main__":
    dim = 32            # C_in of the final expanding head
    num_class = 4       # segmentation classes (C_out)
    patch_size = 4      # kernel == stride of the ConvTranspose3d
    B, D, H, W = 2, 4, 4, 4

    key = jax.random.PRNGKey(0)
    kx, kw, kb = jax.random.split(key, 3)
    x = jax.random.normal(kx, (B, D, H, W, dim), jnp.float32)
    fan_in = dim * patch_size ** 3
    weight = jax.random.normal(
        kw, (dim, num_class, patch_size, patch_size, patch_size), jnp.float32
    ) / math.sqrt(fan_in)
    bias = jax.random.normal(kb, (num_class,), jnp.float32) * 0.01

    fwd = jax.jit(partial(final_patch_expanding_forward, patch_size=patch_size))
    out = jax.block_until_ready(fwd(x, weight, bias))

    # Reference with the same bf16-rounded operands (kernel accumulates in f32,
    # so results agree up to float rounding / summation-order noise).
    xb = x.astype(jnp.bfloat16).astype(jnp.float32)
    wb = weight.astype(jnp.bfloat16).astype(jnp.float32)
    ref = jnp.einsum("bdhwi,ioklm->bdhwklmo", xb, wb) + bias
    ref = ref.transpose(0, 7, 1, 4, 2, 5, 3, 6).reshape(
        B, num_class, D * patch_size, H * patch_size, W * patch_size)

    assert out.shape == (B, num_class, D * patch_size, H * patch_size,
                         W * patch_size), out.shape
    assert bool(jnp.all(jnp.isfinite(out)))
    assert bool(jnp.allclose(out, ref, rtol=1e-3, atol=1e-3))
    print("KERNEL_OK")
</pallas_src>

<mosaic_0001>
module attributes {stable_mosaic.version = 11 : i64} {
  func.func @_linear_bias_kernel(%arg0: i32, %arg1: memref<64x32xf32, #tpu.memory_space<vmem>>, %arg2: memref<32x256xbf16, #tpu.memory_space<vmem>>, %arg3: memref<1x256xf32, #tpu.memory_space<vmem>>, %arg4: memref<64x256xf32, #tpu.memory_space<vmem>>) attributes {dimension_semantics = [#tpu.dimension_semantics<parallel>], iteration_bounds = array<i64: 2>, scalar_prefetch = 0 : i64, scratch_operands = 0 : i64, tpu.core_type = #tpu.core_type<tc>, window_params = [{transform_indices = @transform_0, window_bounds = array<i64: 64, 32>}, {pipeline_mode = #tpu.pipeline_mode<synchronous>, transform_indices = @transform_1, window_bounds = array<i64: 32, 256>}, {pipeline_mode = #tpu.pipeline_mode<synchronous>, transform_indices = @transform_2, window_bounds = array<i64: 1, 256>}, {transform_indices = @transform_3, window_bounds = array<i64: 64, 256>}]} {
    %c0 = arith.constant 0 : index
    %c0_0 = arith.constant 0 : index
    %0 = vector.load %arg1[%c0, %c0_0] : memref<64x32xf32, #tpu.memory_space<vmem>>, vector<64x32xf32>
    %1 = arith.truncf %0 : vector<64x32xf32> to vector<64x32xbf16>
    %c0_1 = arith.constant 0 : index
    %c0_2 = arith.constant 0 : index
    %2 = vector.load %arg2[%c0_1, %c0_2] : memref<32x256xbf16, #tpu.memory_space<vmem>>, vector<32x256xbf16>
    %cst = arith.constant dense<0.000000e+00> : vector<64x256xf32>
    %3 = tpu.matmul %1, %2, %cst {dimension_numbers = #tpu.dot_dimension_numbers<[1], [0], [0], [1], [0, 0, 1, 1], [], []>} : vector<64x32xbf16>, vector<32x256xbf16>, vector<64x256xf32> -> vector<64x256xf32>
    %c0_3 = arith.constant 0 : index
    %c0_4 = arith.constant 0 : index
    %4 = vector.load %arg3[%c0_3, %c0_4] : memref<1x256xf32, #tpu.memory_space<vmem>>, vector<1x256xf32>
    %5 = vector.broadcast %4 : vector<1x256xf32> to vector<64x256xf32>
    %6 = arith.addf %3, %5 : vector<64x256xf32>
    %c0_5 = arith.constant 0 : index
    %c0_6 = arith.constant 0 : index
    %7 = vector.load %arg4[%c0_5, %c0_6] : memref<64x256xf32, #tpu.memory_space<vmem>>, vector<64x256xf32>
    tpu.vector_store %arg4[%c0_5, %c0_6], %6 {strides = array<i32>} : memref<64x256xf32, #tpu.memory_space<vmem>>, vector<64x256xf32>,
    return
  }
  func.func @transform_0(%arg0: i32) -> (i32, i32) {
    %c0_i32 = arith.constant 0 : i32
    %c0_i32_0 = arith.constant 0 : i32
    return %arg0, %c0_i32 : i32, i32
  }
  func.func @transform_1(%arg0: i32) -> (i32, i32) {
    %c0_i32 = arith.constant 0 : i32
    %c0_i32_0 = arith.constant 0 : i32
    %c0_i32_1 = arith.constant 0 : i32
    return %c0_i32, %c0_i32_0 : i32, i32
  }
  func.func @transform_2(%arg0: i32) -> (i32, i32) {
    %c0_i32 = arith.constant 0 : i32
    %c0_i32_0 = arith.constant 0 : i32
    %c0_i32_1 = arith.constant 0 : i32
    return %c0_i32, %c0_i32_0 : i32, i32
  }
  func.func @transform_3(%arg0: i32) -> (i32, i32) {
    %c0_i32 = arith.constant 0 : i32
    %c0_i32_0 = arith.constant 0 : i32
    return %arg0, %c0_i32 : i32, i32
  }
}

</mosaic_0001>

<llo_original>
// kernel: tile.8
$region0: #{tile.8}
  #allocation2 [shape = 's32[1]{0}', space=sflag, size = 0x4, scoped, tag = 'scoped memory for tile.8']
  %s0 = inlined_call_operand.hbm [shape: f32[4], index: 0, kind: input, shape index: {}]
  %s1 = inlined_call_operand.vmem [shape: f32[64,4], index: 1, kind: output, shape index: {}]
  $region1: #{tile.8} parent=0
    #allocation0 [shape = 'u8[512]{0}', space=vmem, size = 0x400, scoped, tag = 'operand span for operand 0']
    #allocation1 [shape = 's32[1]{0}', space=sflag, size = 0x4, scoped, tag = 'scoped memory for tile.8']
    %2 = vsyncpa [#allocation1], 0
    // Predicated region
    $region2: #{tile.8} parent=1 // pred_check
      _
    $region3: #{tile.8} parent=1 // pred_check_branch
      %4 = sbr.rel (0) target = $region5
    $region4: #{tile.8} parent=1 // pred_region
      %s6 = ssub.s32 16, 16
      %7 = vsyncadd [#allocation1], %s6
      %s9 = sshll.u32 [#allocation0], 4
      %s10 = int_to_ptr.vmem [resolvable:$true] %s9
      %12 = dma.hbm_to_vmem [thread:$0]  %s0, 16, %s10, [#allocation1]
    $region5: #{tile.8} parent=1 // pred_fallthru
      _
    // Predicated region
    $region6: #{tile.8} parent=1 // pred_check
      _
    $region7: #{tile.8} parent=1 // pred_check_branch
      %14 = sbr.rel (0) target = $region9
    $region8: #{tile.8} parent=1 // pred_region
      %15 = dma.done [#allocation1], 16
    $region9: #{tile.8} parent=1 // pred_fallthru
      _
    %v16 = vld [vmem:[#allocation0] ss:$0 sm:$0xff]
    %17 = vst [vmem:[%s1] sm:$0xff] %v16
    %s18 = scalar_lea.vmem %s1, 8
    %19 = vst [vmem:[%s18] sm:$0xff] %v16
    %s20 = scalar_lea.vmem %s1, 16
    %21 = vst [vmem:[%s20] sm:$0xff] %v16
    %s22 = scalar_lea.vmem %s1, 24
    %23 = vst [vmem:[%s22] sm:$0xff] %v16
    %s24 = scalar_lea.vmem %s1, 32
    %25 = vst [vmem:[%s24] sm:$0xff] %v16
    %s26 = scalar_lea.vmem %s1, 40
    %27 = vst [vmem:[%s26] sm:$0xff] %v16
    %s28 = scalar_lea.vmem %s1, 48
    %29 = vst [vmem:[%s28] sm:$0xff] %v16
    %s30 = scalar_lea.vmem %s1, 56
    %31 = vst [vmem:[%s30] sm:$0xff] %v16
    %32 = vsyncpa [#allocation1], 1

// kernel: tile.9
$region0: #{tile.9}
  %s0 = inlined_call_operand.vmem [shape: f32[64,4], index: 0, kind: input, shape index: {}]
  %s1 = inlined_call_operand.vmem [shape: f32[1,256], index: 1, kind: output, shape index: {}]
  $region1: #{tile.9} parent=0
    #allocation0 [shape = 'u8[8192]{0}', space=vmem, size = 0x2000, scoped, tag = 'scoped mem for output reshape']
    %v2 = vld [vmem:[%s0] sm:$0x1]
    %s3 = scalar_lea.vmem %s0, 31
    %v4 = vld [vmem:[%s3] sm:$0x2]
    %vm5 = vcmask 1041409
    %v6 = vsel %vm5, %v4, %v2
    %vm7 = vcmask 31744
    %8 = vst.msk [vmem:[#allocation0] ss:$8 sm:$0x3] %vm7, %v6
    %s9 = scalar_lea.vmem %s0, 31
    %v10 = vld [vmem:[%s9] sm:$0x1]
    %s11 = scalar_lea.vmem %s0, 62
    %v12 = vld [vmem:[%s11] sm:$0x2]
    %vm13 = vcmask 1041409
    %v14 = vsel %vm13, %v12, %v10
    %15 = vrot.lane.b32.xlu0 %v14, 124
    %v16 = vpop.permute.xlu0 %15
    %vm17 = vcmask 1048544
    %18 = vst.msk [vmem:[#allocation0] ss:$8 sm:$0x3] %vm17, %v16
    %s19 = scalar_lea.vmem %s0, 30
    %v20 = vld [vmem:[%s19] sm:$0x1]
    %s21 = scalar_lea.vmem %s0, 61
    %v22 = vld [vmem:[%s21] sm:$0x2]
    %vm23 = vcmask 1041409
    %v24 = vsel %vm23, %v22, %v20
    %25 = vrot.lane.b32.xlu0 %v24, 120
    %v26 = vpop.permute.xlu0 %25
    %vm27 = vcmask 1015744
    %28 = vst.msk [vmem:[#allocation0] ss:$8 sm:$0x3] %vm27, %v26
    %s29 = scalar_lea.vmem %s0, 29
    %v30 = vld [vmem:[%s29] sm:$0x1]
    %s31 = scalar_lea.vmem %s0, 60
    %v32 = vld [vmem:[%s31] sm:$0x2]
    %vm33 = vcmask 1041409
    %v34 = vsel %vm33, %v32, %v30
    %35 = vrot.lane.b32.xlu0 %v34, 116
    %v36 = vpop.permute.xlu0 %35
    %vm37 = vcmask 982944
    %38 = vst.msk [vmem:[#allocation0] ss:$8 sm:$0x3] %vm37, %v36
    %s39 = scalar_lea.vmem %s0, 28
    %v40 = vld [vmem:[%s39] sm:$0x1]
    %s41 = scalar_lea.vmem %s0, 59
    %v42 = vld [vmem:[%s41] sm:$0x2]
    %vm43 = vcmask 1041409
    %v44 = vsel %vm43, %v42, %v40
    %45 = vrot.lane.b32.xlu0 %v44, 112
    %v46 = vpop.permute.xlu0 %45
    %vm47 = vcmask 950144
    %48 = vst.msk [vmem:[#allocation0] ss:$8 sm:$0x3] %vm47, %v46
    %s49 = scalar_lea.vmem %s0, 27
    %v50 = vld [vmem:[%s49] sm:$0x1]
    %s51 = scalar_lea.vmem %s0, 58
    %v52 = vld [vmem:[%s51] sm:$0x2]
    %vm53 = vcmask 1041409
    %v54 = vsel %vm53, %v52, %v50
    %55 = vrot.lane.b32.xlu0 %v54, 108
    %v56 = vpop.permute.xlu0 %55
    %vm57 = vcmask 917344
    %58 = vst.msk [vmem:[#allocation0] ss:$8 sm:$0x3] %vm57, %v56
    %s59 = scalar_lea.vmem %s0, 26
    %v60 = vld [vmem:[%s59] sm:$0x1]
    %s61 = scalar_lea.vmem %s0, 57
    %v62 = vld [vmem:[%s61] sm:$0x2]
    %vm63 = vcmask 1041409
    %v64 = vsel %vm63, %v62, %v60
    %65 = vrot.lane.b32.xlu0 %v64, 104
    %v66 = vpop.permute.xlu0 %65
    %vm67 = vcmask 884544
    %68 = vst.msk [vmem:[#allocation0] ss:$8 sm:$0x3] %vm67, %v66
    %s69 = scalar_lea.vmem %s0, 25
    %v70 = vld [vmem:[%s69] sm:$0x1]
    %s71 = scalar_lea.vmem %s0, 56
    %v72 = vld [vmem:[%s71] sm:$0x2]
    %vm73 = vcmask 1041409
    %v74 = vsel %vm73, %v72, %v70
    %75 = vrot.lane.b32.xlu0 %v74, 100
    %v76 = vpop.permute.xlu0 %75
    %vm77 = vcmask 851744
    %78 = vst.msk [vmem:[#allocation0] ss:$8 sm:$0x3] %vm77, %v76
    %s79 = scalar_lea.vmem %s0, 24
    %v80 = vld [vmem:[%s79] sm:$0x1]
    %s81 = scalar_lea.vmem %s0, 55
    %v82 = vld [vmem:[%s81] sm:$0x2]
    %vm83 = vcmask 1041409
    %v84 = vsel %vm83, %v82, %v80
    %85 = vrot.lane.b32.xlu0 %v84, 96
    %v86 = vpop.permute.xlu0 %85
    %vm87 = vcmask 818944
    %88 = vst.msk [vmem:[#allocation0] ss:$8 sm:$0x3] %vm87, %v86
    %s89 = scalar_lea.vmem %s0, 23
    %v90 = vld [vmem:[%s89] sm:$0x1]
    %s91 = scalar_lea.vmem %s0, 54
    %v92 = vld [vmem:[%s91] sm:$0x2]
    %vm93 = vcmask 1041409
    %v94 = vsel %vm93, %v92, %v90
    %95 = vrot.lane.b32.xlu0 %v94, 92
    %v96 = vpop.permute.xlu0 %95
    %vm97 = vcmask 786144
    %98 = vst.msk [vmem:[#allocation0] ss:$8 sm:$0x3] %vm97, %v96
    %s99 = scalar_lea.vmem %s0, 22
    %v100 = vld [vmem:[%s99] sm:$0x1]
    %s101 = scalar_lea.vmem %s0, 53
    %v102 = vld [vmem:[%s101] sm:$0x2]
    %vm103 = vcmask 1041409
    %v104 = vsel %vm103, %v102, %v100
    %105 = vrot.lane.b32.xlu0 %v104, 88
    %v106 = vpop.permute.xlu0 %105
    %vm107 = vcmask 753344
    %108 = vst.msk [vmem:[#allocation0] ss:$8 sm:$0x3] %vm107, %v106
    %s109 = scalar_lea.vmem %s0, 21
    %v110 = vld [vmem:[%s109] sm:$0x1]
    %s111 = scalar_lea.vmem %s0, 52
    %v112 = vld [vmem:[%s111] sm:$0x2]
    %vm113 = vcmask 1041409
    %v114 = vsel %vm113, %v112, %v110
    %115 = vrot.lane.b32.xlu0 %v114, 84
    %v116 = vpop.permute.xlu0 %115
    %vm117 = vcmask 720544
    %118 = vst.msk [vmem:[#allocation0] ss:$8 sm:$0x3] %vm117, %v116
    %s119 = scalar_lea.vmem %s0, 20
    %v120 = vld [vmem:[%s119] sm:$0x1]
    %s121 = scalar_lea.vmem %s0, 51
    %v122 = vld [vmem:[%s121] sm:$0x2]
    %vm123 = vcmask 1041409
    %v124 = vsel %vm123, %v122, %v120
    %125 = vrot.lane.b32.xlu0 %v124, 80
    %v126 = vpop.permute.xlu0 %125
    %vm127 = vcmask 687744
    %128 = vst.msk [vmem:[#allocation0] ss:$8 sm:$0x3] %vm127, %v126
    %s129 = scalar_lea.vmem %s0, 19
    %v130 = vld [vmem:[%s129] sm:$0x1]
    %s131 = scalar_lea.vmem %s0, 50
    %v132 = vld [vmem:[%s131] sm:$0x2]
    %vm133 = vcmask 1041409
    %v134 = vsel %vm133, %v132, %v130
    %135 = vrot.lane.b32.xlu0 %v134, 76
    %v136 = vpop.permute.xlu0 %135
    %vm137 = vcmask 654944
    %138 = vst.msk [vmem:[#allocation0] ss:$8 sm:$0x3] %vm137, %v136
    %s139 = scalar_lea.vmem %s0, 18
    %v140 = vld [vmem:[%s139] sm:$0x1]
    %s141 = scalar_lea.vmem %s0, 49
    %v142 = vld [vmem:[%s141] sm:$0x2]
    %vm143 = vcmask 1041409
    %v144 = vsel %vm143, %v142, %v140
    %145 = vrot.lane.b32.xlu0 %v144, 72
    %v146 = vpop.permute.xlu0 %145
    %vm147 = vcmask 622144
    %148 = vst.msk [vmem:[#allocation0] ss:$8 sm:$0x3] %vm147, %v146
    %s149 = scalar_lea.vmem %s0, 17
    %v150 = vld [vmem:[%s149] sm:$0x1]
    %s151 = scalar_lea.vmem %s0, 48
    %v152 = vld [vmem:[%s151] sm:$0x2]
    %vm153 = vcmask 1041409
    %v154 = vsel %vm153, %v152, %v150
    %155 = vrot.lane.b32.xlu0 %v154, 68
    %v156 = vpop.permute.xlu0 %155
    %vm157 = vcmask 589344
    %158 = vst.msk [vmem:[#allocation0] ss:$8 sm:$0x3] %vm157, %v156
    %s159 = scalar_lea.vmem %s0, 16
    %v160 = vld [vmem:[%s159] sm:$0x1]
    %s161 = scalar_lea.vmem %s0, 47
    %v162 = vld [vmem:[%s161] sm:$0x2]
    %vm163 = vcmask 1041409
    %v164 = vsel %vm163, %v162, %v160
    %165 = vrot.lane.b32.xlu0 %v164, 64
    %v166 = vpop.permute.xlu0 %165
    %vm167 = vcmask 556544
    %168 = vst.msk [vmem:[#allocation0] ss:$8 sm:$0x3] %vm167, %v166
    %s169 = scalar_lea.vmem %s0, 15
    %v170 = vld [vmem:[%s169] sm:$0x1]
    %s171 = scalar_lea.vmem %s0, 46
    %v172 = vld [vmem:[%s171] sm:$0x2]
    %vm173 = vcmask 1041409
    %v174 = vsel %vm173, %v172, %v170
    %175 = vrot.lane.b32.xlu0 %v174, 60
    %v176 = vpop.permute.xlu0 %175
    %vm177 = vcmask 523744
    %178 = vst.msk [vmem:[#allocation0] ss:$8 sm:$0x3] %vm177, %v176
    %s179 = scalar_lea.vmem %s0, 14
    %v180 = vld [vmem:[%s179] sm:$0x1]
    %s181 = scalar_lea.vmem %s0, 45
    %v182 = vld [vmem:[%s181] sm:$0x2]
    %vm183 = vcmask 1041409
    %v184 = vsel %vm183, %v182, %v180
    %185 = vrot.lane.b32.xlu0 %v184, 56
    %v186 = vpop.permute.xlu0 %185
    %vm187 = vcmask 490944
    %188 = vst.msk [vmem:[#allocation0] ss:$8 sm:$0x3] %vm187, %v186
    %s189 = scalar_lea.vmem %s0, 13
    %v190 = vld [vmem:[%s189] sm:$0x1]
    %s191 = scalar_lea.vmem %s0, 44
    %v192 = vld [vmem:[%s191] sm:$0x2]
    %vm193 = vcmask 1041409
    %v194 = vsel %vm193, %v192, %v190
    %195 = vrot.lane.b32.xlu0 %v194, 52
    %v196 = vpop.permute.xlu0 %195
    %vm197 = vcmask 458144
    %198 = vst.msk [vmem:[#allocation0] ss:$8 sm:$0x3] %vm197, %v196
    %s199 = scalar_lea.vmem %s0, 12
    %v200 = vld [vmem:[%s199] sm:$0x1]
    %s201 = scalar_lea.vmem %s0, 43
    %v202 = vld [vmem:[%s201] sm:$0x2]
    %vm203 = vcmask 1041409
    %v204 = vsel %vm203, %v202, %v200
    %205 = vrot.lane.b32.xlu0 %v204, 48
    %v206 = vpop.permute.xlu0 %205
    %vm207 = vcmask 425344
    %208 = vst.msk [vmem:[#allocation0] ss:$8 sm:$0x3] %vm207, %v206
    %s209 = scalar_lea.vmem %s0, 11
    %v210 = vld [vmem:[%s209] sm:$0x1]
    %s211 = scalar_lea.vmem %s0, 42
    %v212 = vld [vmem:[%s211] sm:$0x2]
    %vm213 = vcmask 1041409
    %v214 = vsel %vm213, %v212, %v210
    %215 = vrot.lane.b32.xlu0 %v214, 44
    %v216 = vpop.permute.xlu0 %215
    %vm217 = vcmask 392544
    %218 = vst.msk [vmem:[#allocation0] ss:$8 sm:$0x3] %vm217, %v216
    %s219 = scalar_lea.vmem %s0, 10
    %v220 = vld [vmem:[%s219] sm:$0x1]
    %s221 = scalar_lea.vmem %s0, 41
    %v222 = vld [vmem:[%s221] sm:$0x2]
    %vm223 = vcmask 1041409
    %v224 = vsel %vm223, %v222, %v220
    %225 = vrot.lane.b32.xlu0 %v224, 40
    %v226 = vpop.permute.xlu0 %225
    %vm227 = vcmask 359744
    %228 = vst.msk [vmem:[#allocation0] ss:$8 sm:$0x3] %vm227, %v226
    %s229 = scalar_lea.vmem %s0, 9
    %v230 = vld [vmem:[%s229] sm:$0x1]
    %s231 = scalar_lea.vmem %s0, 40
    %v232 = vld [vmem:[%s231] sm:$0x2]
    %vm233 = vcmask 1041409
    %v234 = vsel %vm233, %v232, %v230
    %235 = vrot.lane.b32.xlu0 %v234, 36
    %v236 = vpop.permute.xlu0 %235
    %vm237 = vcmask 326944
    %238 = vst.msk [vmem:[#allocation0] ss:$8 sm:$0x3] %vm237, %v236
    %s239 = scalar_lea.vmem %s0, 8
    %v240 = vld [vmem:[%s239] sm:$0x1]
    %s241 = scalar_lea.vmem %s0, 39
    %v242 = vld [vmem:[%s241] sm:$0x2]
    %vm243 = vcmask 1041409
    %v244 = vsel %vm243, %v242, %v240
    %245 = vrot.lane.b32.xlu0 %v244, 32
    %v246 = vpop.permute.xlu0 %245
    %vm247 = vcmask 294144
    %248 = vst.msk [vmem:[#allocation0] ss:$8 sm:$0x3] %vm247, %v246
    %s249 = scalar_lea.vmem %s0, 7
    %v250 = vld [vmem:[%s249] sm:$0x1]
    %s251 = scalar_lea.vmem %s0, 38
    %v252 = vld [vmem:[%s251] sm:$0x2]
    %vm253 = vcmask 1041409
    %v254 = vsel %vm253, %v252, %v250
    %255 = vrot.lane.b32.xlu0 %v254, 28
    %v256 = vpop.permute.xlu0 %255
    %vm257 = vcmask 261344
    %258 = vst.msk [vmem:[#allocation0] ss:$8 sm:$0x3] %vm257, %v256
    %s259 = scalar_lea.vmem %s0, 6
    %v260 = vld [vmem:[%s259] sm:$0x1]
    %s261 = scalar_lea.vmem %s0, 37
    %v262 = vld [vmem:[%s261] sm:$0x2]
    %vm263 = vcmask 1041409
    %v264 = vsel %vm263, %v262, %v260
    %265 = vrot.lane.b32.xlu0 %v264, 24
    %v266 = vpop.permute.xlu0 %265
    %vm267 = vcmask 228544
    %268 = vst.msk [vmem:[#allocation0] ss:$8 sm:$0x3] %vm267, %v266
    %s269 = scalar_lea.vmem %s0, 5
    %v270 = vld [vmem:[%s269] sm:$0x1]
    %s271 = scalar_lea.vmem %s0, 36
    %v272 = vld [vmem:[%s271] sm:$0x2]
    %vm273 = vcmask 1041409
    %v274 = vsel %vm273, %v272, %v270
    %275 = vrot.lane.b32.xlu0 %v274, 20
    %v276 = vpop.permute.xlu0 %275
    %vm277 = vcmask 195744
    %278 = vst.msk [vmem:[#allocation0] ss:$8 sm:$0x3] %vm277, %v276
    %s279 = scalar_lea.vmem %s0, 4
    %v280 = vld [vmem:[%s279] sm:$0x1]
    %s281 = scalar_lea.vmem %s0, 35
    %v282 = vld [vmem:[%s281] sm:$0x2]
    %vm283 = vcmask 1041409
    %v284 = vsel %vm283, %v282, %v280
    %285 = vrot.lane.b32.xlu0 %v284, 16
    %v286 = vpop.permute.xlu0 %285
    %vm287 = vcmask 162944
    %288 = vst.msk [vmem:[#allocation0] ss:$8 sm:$0x3] %vm287, %v286
    %s289 = scalar_lea.vmem %s0, 3
    %v290 = vld [vmem:[%s289] sm:$0x1]
    %s291 = scalar_lea.vmem %s0, 34
    %v292 = vld [vmem:[%s291] sm:$0x2]
    %vm293 = vcmask 1041409
    %v294 = vsel %vm293, %v292, %v290
    %295 = vrot.lane.b32.xlu0 %v294, 12
    %v296 = vpop.permute.xlu0 %295
    %vm297 = vcmask 130144
    %298 = vst.msk [vmem:[#allocation0] ss:$8 sm:$0x3] %vm297, %v296
    %s299 = scalar_lea.vmem %s0, 2
    %v300 = vld [vmem:[%s299] sm:$0x1]
    %s301 = scalar_lea.vmem %s0, 33
    %v302 = vld [vmem:[%s301] sm:$0x2]
    %vm303 = vcmask 1041409
    %v304 = vsel %vm303, %v302, %v300
    %305 = vrot.lane.b32.xlu0 %v304, 8
    %v306 = vpop.permute.xlu0 %305
    %vm307 = vcmask 97344
    %308 = vst.msk [vmem:[#allocation0] ss:$8 sm:$0x3] %vm307, %v306
    %s309 = scalar_lea.vmem %s0, 1
    %v310 = vld [vmem:[%s309] sm:$0x1]
    %s311 = scalar_lea.vmem %s0, 32
    %v312 = vld [vmem:[%s311] sm:$0x2]
    %vm313 = vcmask 1041409
    %v314 = vsel %vm313, %v312, %v310
    %315 = vrot.lane.b32.xlu0 %v314, 4
    %v316 = vpop.permute.xlu0 %315
    %vm317 = vcmask 64544
    %318 = vst.msk [vmem:[#allocation0] ss:$8 sm:$0x3] %vm317, %v316
    %s320 = sshllo.u32 0, 1
    %v322 = vld [vmem:[#allocation0] sm:%s320]
    %s323 = sshllo.u32 0, 1
    %324 = vst [vmem:[%s1] sm:%s323] %v322
    %s325 = scalar_lea.vmem [#allocation0], 8
    %v326 = vld [vmem:[%s325] sm:%s320]
    %s327 = sshllo.u32 0, 1
    %s328 = scalar_lea.vmem %s1, 1
    %329 = vst [vmem:[%s328] sm:%s327] %v326

// kernel: final_patch_expanding_forward.1
$region0: #{final_patch_expanding_forward.1}
  #allocation0 [shape = 'u32[]', space=smem, size = 0x4, offset = 0x4, fixed_abs, tag = 'smem constant byte address 0x4 - core index']
  #allocation1 [shape = 'u32[144,128]{1,0:T(1,128)}', space=vmem, size = 0x12000, scoped, tag = 'internal scratch']
  %s0 = inlined_call_operand.hbm [shape: f32[128,32], index: 0, kind: input, shape index: {}]
  %s1 = inlined_call_operand.vmem [shape: bf16[32,256], index: 1, kind: input, shape index: {}]
  %s2 = inlined_call_operand.vmem [shape: f32[1,256], index: 2, kind: input, shape index: {}]
  %s3 = inlined_call_operand.vmem [shape: f32[128,256], index: 3, kind: output, shape index: {}]
  %s4 = sld [smem:[#allocation0]]
  $region49: #{final_patch_expanding_forward.1} parent=0
    _
  %s6 = ssub.s32 1, %s4
  %s7 = scalar_select 0, %s6, %s4
  $region1: #{final_patch_expanding_forward.1} parent=0
    #allocation2 [shape = 'u8[65536]{0}', space=vmem, size = 0x10000, scoped, tag = 'input window, operand 0']
    #allocation3 [shape = 's32[2]{0}', space=sflag, size = 0x8, scoped, tag = 'scoped memory for final_patch_expanding_forward.1']
    %8 = vsyncpa [#allocation3], 0
    %s9 = scalar_lea.sflag [#allocation3], 1
    %10 = vsyncpa %s9, 0
    loop: start=0, step=1, limit=4
    $region2: #{final_patch_expanding_forward.1} parent=1 // loop_pre_header
      _
    $region3: #{final_patch_expanding_forward.1} parent=1 // loop_header
      %s12 = sphi 0, %s16
      %p13 = scmp.ge.s32.totalorder %s12, 4
      %s22 = sphi 0, %s24
      %s25 = sphi 0, %s22
      %s26 = sphi 0, %s25
      %s42 = sphi 0, %s26
      %s46 = sphi 0, %s46
      %s48 = sphi 0, %s46
      %s49 = sphi 0, %s48
      %s63 = sphi 0, %s49
      %s67 = sphi 0, %s67
      %s69 = sphi 0, %s67
      %s70 = sphi 0, %s69
      %s84 = sphi 0, %s70
      %s90 = sphi 0, %s92
      %s93 = sphi 0, %s90
      %s94 = sphi 0, %s93
      %s110 = sphi 0, %s94
    $region4: #{final_patch_expanding_forward.1} parent=1 // loop_header_branch
      %15 = sbr.rel (%p13) target = $region8
    $region5: #{final_patch_expanding_forward.1} parent=1 // loop_body
      %s17 = ssub.s32 %s12, 1
      %s18 = ssub.s32 %s12, 2
      %s19 = sadd.s32 %s12, 1
      %s20 = ssub.s32 %s12, %s19
      %p21 = scmp.eq.s32.totalorder %s20, 0
      %s23 = sadd.s32 %s22, 1
      %s24 = scalar_select %p21, %s22, %s23
      %p27 = pneg %p21
      %p28 = scmp.eq.s32.totalorder %s12, 1
      %p29 = por %p27, %p28
      %p30 = scmp.ne.s32.totalorder %s22, %s25
      %p31 = scmp.eq.s32.totalorder %s12, 0
      %p32 = por %p30, %p31
      %p33 = scmp.ne.s32.totalorder %s22, %s25
      %p34 = scmp.eq.s32.totalorder %s17, 1
      %p35 = por %p33, %p34
      %p36 = scmp.ne.s32.totalorder %s25, %s26
      %p37 = scmp.eq.s32.totalorder %s17, 0
      %p38 = por %p36, %p37
      %p39 = scmp.ne.s32.totalorder %s25, %s26
      %p40 = scmp.eq.s32.totalorder %s18, 1
      %p41 = por %p39, %p40
      %p43 = scmp.ne.s32.totalorder %s26, %s42
      %p44 = scmp.eq.s32.totalorder %s18, 0
      %p45 = por %p43, %p44
      %s47 = sadd.s32 %s46, 1
      %p50 = scmp.eq.s32.totalorder %s12, 1
      %p51 = scmp.ne.s32.totalorder %s46, %s48
      %p52 = scmp.eq.s32.totalorder %s12, 0
      %p53 = por %p51, %p52
      %p54 = scmp.ne.s32.totalorder %s46, %s48
      %p55 = scmp.eq.s32.totalorder %s17, 1
      %p56 = por %p54, %p55
      %p57 = scmp.ne.s32.totalorder %s48, %s49
      %p58 = scmp.eq.s32.totalorder %s17, 0
      %p59 = por %p57, %p58
      %p60 = scmp.ne.s32.totalorder %s48, %s49
      %p61 = scmp.eq.s32.totalorder %s18, 1
      %p62 = por %p60, %p61
      %p64 = scmp.ne.s32.totalorder %s49, %s63
      %p65 = scmp.eq.s32.totalorder %s18, 0
      %p66 = por %p64, %p65
      %s68 = sadd.s32 %s67, 1
      %p71 = scmp.eq.s32.totalorder %s12, 1
      %p72 = scmp.ne.s32.totalorder %s67, %s69
      %p73 = scmp.eq.s32.totalorder %s12, 0
      %p74 = por %p72, %p73
      %p75 = scmp.ne.s32.totalorder %s67, %s69
      %p76 = scmp.eq.s32.totalorder %s17, 1
      %p77 = por %p75, %p76
      %p78 = scmp.ne.s32.totalorder %s69, %s70
      %p79 = scmp.eq.s32.totalorder %s17, 0
      %p80 = por %p78, %p79
      %p81 = scmp.ne.s32.totalorder %s69, %s70
      %p82 = scmp.eq.s32.totalorder %s18, 1
      %p83 = por %p81, %p82
      %p85 = scmp.ne.s32.totalorder %s70, %s84
      %p86 = scmp.eq.s32.totalorder %s18, 0
      %p87 = por %p85, %p86
      %s88 = ssub.s32 %s12, %s19
      %p89 = scmp.eq.s32.totalorder %s88, 0
      %s91 = sadd.s32 %s90, 1
      %s92 = scalar_select %p89, %s90, %s91
      %p95 = pneg %p89
      %p96 = scmp.eq.s32.totalorder %s12, 1
      %p97 = por %p95, %p96
      %p98 = scmp.ne.s32.totalorder %s90, %s93
      %p99 = scmp.eq.s32.totalorder %s12, 0
      %p100 = por %p98, %p99
      %p101 = scmp.ne.s32.totalorder %s90, %s93
      %p102 = scmp.eq.s32.totalorder %s17, 1
      %p103 = por %p101, %p102
      %p104 = scmp.ne.s32.totalorder %s93, %s94
      %p105 = scmp.eq.s32.totalorder %s17, 0
      %p106 = por %p104, %p105
      %p107 = scmp.ne.s32.totalorder %s93, %s94
      %p108 = scmp.eq.s32.totalorder %s18, 1
      %p109 = por %p107, %p108
      %p111 = scmp.ne.s32.totalorder %s94, %s110
      %p112 = scmp.eq.s32.totalorder %s18, 0
      %p113 = por %p111, %p112
      %p114 = scmp.le.s32.totalorder 1, %s12
      %p115 = scmp.lt.s32.totalorder %s12, 3
      %p116 = pnand %p114, %p115
      %p117 = pneg %p116
      // Predicated region
      $region9: #{final_patch_expanding_forward.1} parent=5 // pred_check
        _
      $region10: #{final_patch_expanding_forward.1} parent=5 // pred_check_branch
        %119 = sbr.rel (%p116) target = $region12
      $region11: #{final_patch_expanding_forward.1} parent=5 // pred_region
        %s120 = ssub.s32 %s12, 1
        // Predicated region
        $region13: #{final_patch_expanding_forward.1} parent=11 // pred_check
          %p121 = pneg %p59
        $region14: #{final_patch_expanding_forward.1} parent=11 // pred_check_branch
          %123 = sbr.rel (%p121) target = $region16
        $region15: #{final_patch_expanding_forward.1} parent=11 // pred_region
          _
        $region16: #{final_patch_expanding_forward.1} parent=11 // pred_fallthru
          _
        // Predicated region
        $region17: #{final_patch_expanding_forward.1} parent=11 // pred_check
          %p124 = pneg %p80
        $region18: #{final_patch_expanding_forward.1} parent=11 // pred_check_branch
          %126 = sbr.rel (%p124) target = $region20
        $region19: #{final_patch_expanding_forward.1} parent=11 // pred_region
          _
        $region20: #{final_patch_expanding_forward.1} parent=11 // pred_fallthru
          _
      $region12: #{final_patch_expanding_forward.1} parent=5 // pred_fallthru
        _
      %p127 = scmp.lt.s32.totalorder %s12, 2
      // Predicated region
      $region21: #{final_patch_expanding_forward.1} parent=5 // pred_check
        %p128 = pneg %p127
      $region22: #{final_patch_expanding_forward.1} parent=5 // pred_check_branch
        %130 = sbr.rel (%p128) target = $region24
      $region23: #{final_patch_expanding_forward.1} parent=5 // pred_region
        // Predicated region
        $region25: #{final_patch_expanding_forward.1} parent=23 // pred_check
          %p131 = pneg %p32
        $region26: #{final_patch_expanding_forward.1} parent=23 // pred_check_branch
          %133 = sbr.rel (%p131) target = $region28
        $region27: #{final_patch_expanding_forward.1} parent=23 // pred_region
          %s134 = sand.u32 %s22, 1
          %s135 = scalar_lea.sflag [#allocation3], %s134
          %s136 = sand.u32 %s22, 1
          %s137 = smul.addr %s136, 64
          %s138 = scalar_lea.vmem [#allocation2], %s137
          %s139 = smul.u32 8, %s12
          %s141 = ssub.s32 1024, 1024
          %142 = vsyncadd %s135, %s141
          %s143 = smul.addr %s139, 128
          %s144 = scalar_lea.hbm %s0, %s143
          %s145 = sshll.u32 %s138, 4
          %s146 = int_to_ptr.vmem [resolvable:$true] %s145
          %151 = dma.hbm_to_vmem [thread:$0]  %s144, 1024, %s146, %s135, 128, 128, 8
        $region28: #{final_patch_expanding_forward.1} parent=23 // pred_fallthru
          _
      $region24: #{final_patch_expanding_forward.1} parent=5 // pred_fallthru
        _
      %p152 = scmp.le.s32.totalorder 1, %s12
      %p153 = scmp.lt.s32.totalorder %s12, 3
      %p154 = pnand %p152, %p153
      %p155 = pneg %p154
      // Predicated region
      $region29: #{final_patch_expanding_forward.1} parent=5 // pred_check
        _
      $region30: #{final_patch_expanding_forward.1} parent=5 // pred_check_branch
        %157 = sbr.rel (%p154) target = $region32
      $region31: #{final_patch_expanding_forward.1} parent=5 // pred_region
        %s158 = ssub.s32 %s12, 1
        %s159 = sand.u32 %s25, 1
        %s160 = scalar_lea.sflag [#allocation3], %s159
        %s161 = sand.u32 %s25, 1
        %s162 = smul.addr %s161, 64
        %s163 = scalar_lea.vmem [#allocation2], %s162
        // Predicated region
        $region33: #{final_patch_expanding_forward.1} parent=31 // pred_check
          %p164 = pneg %p38
        $region34: #{final_patch_expanding_forward.1} parent=31 // pred_check_branch
          %166 = sbr.rel (%p164) target = $region36
        $region35: #{final_patch_expanding_forward.1} parent=31 // pred_region
          %167 = dma.done %s160, 1024
        $region36: #{final_patch_expanding_forward.1} parent=31 // pred_fallthru
          _
        %s168 = sand.u32 %s25, 1
        %s169 = scalar_lea.sflag [#allocation3], %s168
        %s170 = sand.u32 %s25, 1
        %s171 = smul.addr %s170, 64
        %s172 = scalar_lea.vmem [#allocation2], %s171
        %p173 = pneg %p38
        %p174 = pneg %p35
        %p175 = pneg %p59
        %p176 = pneg %p56
        %p177 = pneg %p80
        %p178 = pneg %p77
        %p179 = pneg %p106
        %p180 = pneg %p103
        %s181 = smul.u32 8, %s17
        %p182 = scmp.lt.s32.totalorder %s181, 15
        %s183 = scalar_select %p182, %s181, 15
        %s184 = smul.addr %s183, 2
        %s185 = smul.addr %s184, 8
        %s186 = scalar_lea.vmem %s3, %s185
        %s187 = smul.u32 8, %s17
        %s188 = smul.u32 8, %s17
        %p189 = scmp.lt.s32.totalorder %s188, 15
        %s190 = scalar_select %p189, %s188, 15
        %s191 = smul.addr %s190, 2
        %s192 = smul.addr %s191, 8
        %s193 = scalar_lea.vmem %s3, %s192
        %s194 = smul.u32 8, %s17
        %v196 = vld [vmem:[%s163] sm:$0xff]
        %v197 = vld [vmem:[%s163 + $0x8] sm:$0xff]
        %v198 = vld [vmem:[%s163 + $0x10] sm:$0xff]
        %v199 = vld [vmem:[%s163 + $0x18] sm:$0xff]
        %v200 = vld [vmem:[%s163 + $0x20] sm:$0xff]
        %v201 = vld [vmem:[%s163 + $0x28] sm:$0xff]
        %v202 = vld [vmem:[%s163 + $0x30] sm:$0xff]
        %v203 = vld [vmem:[%s163 + $0x38] sm:$0xff]
        %v204 = vpack.c.bf16 %v197, %v196
        %v205 = vpack.c.bf16 %v199, %v198
        %v206 = vpack.c.bf16 %v201, %v200
        %v207 = vpack.c.bf16 %v203, %v202
        %v208 = vld [vmem:[%s1] sm:$0xff]
        %v209 = vld [vmem:[%s1 + $0x8] sm:$0xff]
        %v210 = vld [vmem:[%s1 + $0x10] sm:$0xff]
        %v211 = vld [vmem:[%s1 + $0x18] sm:$0xff]
        %v212 = vld [vmem:[%s2] sm:$0x3]
        %v214 = vlaneseq
        %v215 = vshrl.u32 %v214, 7
        %v216 = vsub.s32 0, %v215
        %v217 = vrot.slane %v212, %v216
        %v218 = vlaneseq
        %v219 = vshrl.u32 %v218, 7
        %v220 = vsub.s32 1, %v219
        %v221 = vrot.slane %v212, %v220
        %v228 = vunpack.c.l.b16 %v208
        %v229 = vunpack.c.h.b16 %v208
        %v230 = vunpack.c.l.b16 %v209
        %v231 = vunpack.c.h.b16 %v209
        %v232 = vunpack.c.l.b16 %v210
        %v233 = vunpack.c.h.b16 %v210
        %v234 = vunpack.c.l.b16 %v211
        %v235 = vunpack.c.h.b16 %v211
        %v236 = vpack.c.b16 %v230, %v228
        %v237 = vpack.c.b16 %v231, %v229
        %v238 = vpack.c.b16 %v234, %v232
        %v239 = vpack.c.b16 %v235, %v233
        %vm244 = vcmask 261120
        %v246 = vsel %vm244, %v204, 0
        %v249 = vsel %vm244, %v205, 0
        %v252 = vsel %vm244, %v206, 0
        %v255 = vsel %vm244, %v207, 0
        %257 = vmatprep.subr.bf16.mxu0 %v237
        %258 = vmatpush1.bf16.msra.mxu0 %v236
        %259 = vmatprep.subr.bf16.mxu0 %v239
        %260 = vmatpush1.bf16.msra.mxu0 %v238
        %261 = vmatprep.subr.bf16.mxu0 0
        %262 = vmatpush1.bf16.msra.mxu0 0
        %263 = vmatprep.subr.bf16.mxu0 0
        %264 = vmatpush1.bf16.msra.mxu0 0
        %265 = vmatprep.subr.bf16.mxu0 0
        %266 = vmatpush1.bf16.msra.mxu0 0
        %267 = vmatprep.subr.bf16.mxu0 0
        %268 = vmatpush1.bf16.msra.mxu0 0
        %269 = vmatprep.subr.bf16.mxu0 0
        %270 = vmatpush1.bf16.msra.mxu0 0
        %271 = vmatprep.subr.bf16.mxu0 0
        %272 = vmatpush1.bf16.msra.mxu0 0
        %273 = vmatprep.subr.bf16.mxu0 0
        %274 = vmatpush1.bf16.msra.mxu0 0
        %275 = vmatprep.subr.bf16.mxu0 0
        %276 = vmatpush1.bf16.msra.mxu0 0
        %277 = vmatprep.subr.bf16.mxu0 0
        %278 = vmatpush1.bf16.msra.mxu0 0
        %279 = vmatprep.subr.bf16.mxu0 0
        %280 = vmatpush1.bf16.msra.mxu0 0
        %281 = vmatprep.subr.bf16.mxu0 0
        %282 = vmatpush1.bf16.msra.mxu0 0
        %283 = vmatprep.subr.bf16.mxu0 0
        %284 = vmatpush1.bf16.msra.mxu0 0
        %285 = vmatprep.subr.bf16.mxu0 0
        %286 = vmatpush1.bf16.msra.mxu0 0
        %287 = vmatprep.subr.bf16.mxu0 0
        %288 = vmatpush1.bf16.msra.mxu0 0
        %289 = vmatprep.mubr.bf16.mxu0 0
        %290 = vmatmul.mubr.bf16.gmra.mrb[0].mxu0 %v246
        %v291 = vpop.f32.mrb[0].mxu0
        %v292 = vadd.f32 %v217, %v291
        %v293 = vpop.f32.mrb[0].mxu0
        %v294 = vadd.f32 %v221, %v293
        %v295 = vpop.f32.mrb[0].mxu0
        %v296 = vadd.f32 %v217, %v295
        %v297 = vpop.f32.mrb[0].mxu0
        %v298 = vadd.f32 %v221, %v297
        %299 = vmatprep.mubr.bf16.mxu0 0
        %300 = vmatmul.mubr.bf16.gmra.mrb[0].mxu0 %v249
        %v301 = vpop.f32.mrb[0].mxu0
        %v302 = vadd.f32 %v217, %v301
        %v303 = vpop.f32.mrb[0].mxu0
        %v304 = vadd.f32 %v221, %v303
        %v305 = vpop.f32.mrb[0].mxu0
        %v306 = vadd.f32 %v217, %v305
        %v307 = vpop.f32.mrb[0].mxu0
        %v308 = vadd.f32 %v221, %v307
        %309 = vmatprep.mubr.bf16.mxu0 0
        %310 = vmatmul.mubr.bf16.gmra.mrb[0].mxu0 %v252
        %v311 = vpop.f32.mrb[0].mxu0
        %v312 = vadd.f32 %v217, %v311
        %v313 = vpop.f32.mrb[0].mxu0
        %v314 = vadd.f32 %v221, %v313
        %v315 = vpop.f32.mrb[0].mxu0
        %v316 = vadd.f32 %v217, %v315
        %v317 = vpop.f32.mrb[0].mxu0
        %v318 = vadd.f32 %v221, %v317
        %319 = vmatprep.mubr.bf16.mxu0 0
        %320 = vmatmul.mubr.bf16.gmra.mrb[0].mxu0 %v255
        %v321 = vpop.f32.mrb[0].mxu0
        %v322 = vadd.f32 %v217, %v321
        %v323 = vpop.f32.mrb[0].mxu0
        %v324 = vadd.f32 %v221, %v323
        %v325 = vpop.f32.mrb[0].mxu0
        %v326 = vadd.f32 %v217, %v325
        %v327 = vpop.f32.mrb[0].mxu0
        %v328 = vadd.f32 %v221, %v327
        %329 = vdwg.mxu0
        %330 = vst [vmem:[%s193] sm:$0xff] %v292
        %331 = vst [vmem:[%s193 + $0x8] sm:$0xff] %v294
        %332 = vst [vmem:[%s193 + $0x10] sm:$0xff] %v296
        %333 = vst [vmem:[%s193 + $0x18] sm:$0xff] %v298
        %334 = vst [vmem:[%s193 + $0x20] sm:$0xff] %v302
        %335 = vst [vmem:[%s193 + $0x28] sm:$0xff] %v304
        %336 = vst [vmem:[%s193 + $0x30] sm:$0xff] %v306
        %337 = vst [vmem:[%s193 + $0x38] sm:$0xff] %v308
        %338 = vst [vmem:[%s193 + $0x40] sm:$0xff] %v312
        %339 = vst [vmem:[%s193 + $0x48] sm:$0xff] %v314
        %340 = vst [vmem:[%s193 + $0x50] sm:$0xff] %v316
        %341 = vst [vmem:[%s193 + $0x58] sm:$0xff] %v318
        %342 = vst [vmem:[%s193 + $0x60] sm:$0xff] %v322
        %343 = vst [vmem:[%s193 + $0x68] sm:$0xff] %v324
        %344 = vst [vmem:[%s193 + $0x70] sm:$0xff] %v326
        %345 = vst [vmem:[%s193 + $0x78] sm:$0xff] %v328
        %s346 = smul.u32 8, %s17
        %p347 = scmp.lt.s32.totalorder %s346, 15
        %s348 = scalar_select %p347, %s346, 15
        %s349 = smul.addr %s348, 2
        %s350 = smul.addr %s349, 8
        %s351 = scalar_lea.vmem %s3, %s350
        // Predicated region
        $region37: #{final_patch_expanding_forward.1} parent=31 // pred_check
          %p352 = pneg %p103
        $region38: #{final_patch_expanding_forward.1} parent=31 // pred_check_branch
          %354 = sbr.rel (%p352) target = $region40
        $region39: #{final_patch_expanding_forward.1} parent=31 // pred_region
          %s355 = smul.u32 8, %s17
        $region40: #{final_patch_expanding_forward.1} parent=31 // pred_fallthru
          _
      $region32: #{final_patch_expanding_forward.1} parent=5 // pred_fallthru
        _
      %p356 = scmp.le.s32.totalorder 2, %s12
      // Predicated region
      $region41: #{final_patch_expanding_forward.1} parent=5 // pred_check
        %p357 = pneg %p356
      $region42: #{final_patch_expanding_forward.1} parent=5 // pred_check_branch
        %359 = sbr.rel (%p357) target = $region44
      $region43: #{final_patch_expanding_forward.1} parent=5 // pred_region
        %s360 = ssub.s32 %s12, 2
        // Predicated region
        $region45: #{final_patch_expanding_forward.1} parent=43 // pred_check
          %p361 = pneg %p109
        $region46: #{final_patch_expanding_forward.1} parent=43 // pred_check_branch
          %363 = sbr.rel (%p361) target = $region48
        $region47: #{final_patch_expanding_forward.1} parent=43 // pred_region
          %s364 = smul.u32 8, %s18
          %p365 = scmp.lt.s32.totalorder %s364, 15
          %s366 = scalar_select %p365, %s364, 15
          %s367 = smul.addr %s366, 2
          %s368 = smul.addr %s367, 8
          %s369 = scalar_lea.vmem %s3, %s368
        $region48: #{final_patch_expanding_forward.1} parent=43 // pred_fallthru
          _
      $region44: #{final_patch_expanding_forward.1} parent=5 // pred_fallthru
        _
    $region6: #{final_patch_expanding_forward.1} parent=1 // loop_footer
      %s16 = sadd.s32 1, %s12
    $region7: #{final_patch_expanding_forward.1} parent=1 // loop_footer_branch
      %11 = sbr.rel target = $region3
    $region8: #{final_patch_expanding_forward.1} parent=1 // loop_exit
      _
    %370 = vsyncpa [#allocation3], 1
    %s371 = scalar_lea.sflag [#allocation3], 1
    %372 = vsyncpa %s371, 1

</llo_original>
